<compile_context>
chip_gen: v5e
topology: v5e:2x2
jax: 0.10.0
libtpu: 0.0.40
codegen_flags: <defaults>
</compile_context>

<pallas_src>
import math
from functools import partial

import jax
import jax.numpy as jnp
from jax.experimental import pallas as pl
from jax.experimental.pallas import tpu as pltpu


def _round_up(n, m):
    return ((n + m - 1) // m) * m


def _supports_bf16_eup():
    # v6e / v7x have a bf16 EUP path; v5e does not (bf16 cast would only add
    # pack/unpack work there). Conservative default: off.
    try:
        kind = jax.devices()[0].device_kind.lower()
    except Exception:
        return False
    return ("v6" in kind) or ("v7" in kind)


def fourier_features_kernel(x_ref, w_ref, o_ref, *, trans_dtype):
    # x_ref: [tb, in_features], w_ref: [in_features, half_pad], o_ref: [tb, 2*half_pad]
    half_pad = w_ref.shape[1]

    # f = 2*pi * x @ w  -- native-dtype operands on the MXU, f32 accumulation.
    f = (2.0 * math.pi) * jax.lax.dot_general(
        x_ref[...],
        w_ref[...],
        dimension_numbers=(((1,), (0,)), ((), ())),
        preferred_element_type=jnp.float32,
    )
    f = f.astype(trans_dtype)

    # Two direct lane-dense slab stores (no concatenate temp).
    o_ref[:, :half_pad] = jnp.cos(f).astype(o_ref.dtype)
    o_ref[:, half_pad:] = jnp.sin(f).astype(o_ref.dtype)


def fourier_features(x, weight, *, block_b=None):
    """x: [B, in_features], weight: [out_features//2, in_features] -> [B, out_features]."""
    B, in_features = x.shape
    half, in_features_w = weight.shape
    assert in_features == in_features_w
    out_features = 2 * half

    dtype = x.dtype
    itemsize = jnp.dtype(dtype).itemsize
    sub = 16 if itemsize < 4 else 8  # sublane alignment (f32: 8, bf16: 16)

    # Lane-dense output: pad half up to a multiple of 128.
    half_pad = _round_up(half, 128)

    # Batch tile: biggest tile under a ~24 MiB double-buffered working set
    # (safe headroom on v7x's 64 MiB VMEM), capped at 1024 rows.
    if block_b is None:
        budget = 24 << 20
        per_row_bytes = 2 * (in_features + 2 * half_pad) * itemsize  # 2x-buffered x + out rows
        cap = max(sub, (budget // max(per_row_bytes, 1)) // sub * sub)
        block_b = min(_round_up(B, sub), 1024, cap)
    block_b = max(sub, (block_b // sub) * sub)

    # Pad batch so the grid divides evenly (remainder handling).
    B_pad = _round_up(B, block_b)
    x_in = x if B_pad == B else jnp.pad(x, ((0, B_pad - B), (0, 0)))

    # One-time weight transpose (and lane padding) outside the kernel; keep the
    # compute dtype of the input so the MXU sees native (e.g. bf16) operands.
    w_t = weight.astype(dtype).T  # [in_features, half]
    if half_pad != half:
        w_t = jnp.pad(w_t, ((0, 0), (0, half_pad - half)))

    # bf16 transcendentals only help on chips with a bf16 EUP (v6e/v7x).
    trans_dtype = jnp.bfloat16 if (dtype == jnp.bfloat16 and _supports_bf16_eup()) else jnp.float32

    grid = (B_pad // block_b,)

    # Explicit scoped-VMEM limit sized from the actual blocks (double-buffered).
    need = (2 * block_b * in_features
            + 2 * block_b * 2 * half_pad
            + in_features * half_pad) * itemsize
    vmem_limit = int(min(max(2 * need, 32 << 20), 48 << 20))

    out_padded = pl.pallas_call(
        partial(fourier_features_kernel, trans_dtype=trans_dtype),
        out_shape=jax.ShapeDtypeStruct((B_pad, 2 * half_pad), dtype),
        grid_spec=pltpu.PrefetchScalarGridSpec(
            num_scalar_prefetch=0,
            grid=grid,
            in_specs=[
                pl.BlockSpec((block_b, in_features), lambda i: (i, 0)),
                pl.BlockSpec((in_features, half_pad), lambda i: (0, 0)),
            ],
            out_specs=pl.BlockSpec((block_b, 2 * half_pad), lambda i: (i, 0)),
        ),
        compiler_params=pltpu.CompilerParams(
            dimension_semantics=("parallel",),
            vmem_limit_bytes=vmem_limit,
        ),
    )(x_in, w_t)

    if half_pad == half and B_pad == B:
        return out_padded
    # Strip the lane/batch padding (only needed when the model config is not
    # already 128-aligned, e.g. the tiny demo below).
    cos_part = out_padded[:B, :half]
    sin_part = out_padded[:B, half_pad:half_pad + half]
    return jnp.concatenate([cos_part, sin_part], axis=-1)


def fourier_features_ref(x, weight):
    f = 2.0 * math.pi * (x.astype(jnp.float32) @ weight.astype(jnp.float32).T)
    return jnp.concatenate([jnp.cos(f), jnp.sin(f)], axis=-1).astype(x.dtype)


if __name__ == "__main__":
    key = jax.random.PRNGKey(0)
    k_x, k_w = jax.random.split(key)

    B = 8              # batch
    in_features = 4    # small conditioning vector
    out_features = 32  # must be even
    std = 1.0

    # Deterministic parameter init (matches torch.randn(...) * std in shape/semantics).
    weight = jax.random.normal(k_w, (out_features // 2, in_features), jnp.float32) * std
    x = jax.random.normal(k_x, (B, in_features), jnp.float32)

    out = fourier_features(x, weight)
    out = jax.block_until_ready(out)

    ref = fourier_features_ref(x, weight)
    assert out.shape == (B, out_features), out.shape
    assert jnp.allclose(out, ref, atol=1e-5, rtol=1e-5), float(jnp.max(jnp.abs(out - ref)))

    print("KERNEL_OK")
</pallas_src>

<mosaic_0001>
module attributes {stable_mosaic.version = 11 : i64} {
  func.func @fourier_features_kernel(%arg0: i32, %arg1: memref<8x4xf32, #tpu.memory_space<vmem>>, %arg2: memref<4x128xf32, #tpu.memory_space<vmem>>, %arg3: memref<8x256xf32, #tpu.memory_space<vmem>>) attributes {dimension_semantics = [#tpu.dimension_semantics<parallel>], iteration_bounds = array<i64: 1>, scalar_prefetch = 0 : i64, scratch_operands = 0 : i64, tpu.core_type = #tpu.core_type<tc>, window_params = [{transform_indices = @transform_0, window_bounds = array<i64: 8, 4>}, {pipeline_mode = #tpu.pipeline_mode<synchronous>, transform_indices = @transform_1, window_bounds = array<i64: 4, 128>}, {transform_indices = @transform_2, window_bounds = array<i64: 8, 256>}]} {
    %c0 = arith.constant 0 : index
    %c0_0 = arith.constant 0 : index
    %0 = vector.load %arg1[%c0, %c0_0] : memref<8x4xf32, #tpu.memory_space<vmem>>, vector<8x4xf32>
    %c0_1 = arith.constant 0 : index
    %c0_2 = arith.constant 0 : index
    %1 = vector.load %arg2[%c0_1, %c0_2] : memref<4x128xf32, #tpu.memory_space<vmem>>, vector<4x128xf32>
    %cst = arith.constant dense<0.000000e+00> : vector<8x128xf32>
    %2 = tpu.matmul %0, %1, %cst {dimension_numbers = #tpu.dot_dimension_numbers<[1], [0], [0], [1], [0, 0, 1, 1], [], []>} : vector<8x4xf32>, vector<4x128xf32>, vector<8x128xf32> -> vector<8x128xf32>
    %cst_3 = arith.constant 6.28318548 : f32
    %3 = vector.broadcast %cst_3 : f32 to vector<8x128xf32>
    %4 = arith.mulf %3, %2 : vector<8x128xf32>
    %5 = math.cos %4 : vector<8x128xf32>
    %c0_4 = arith.constant 0 : index
    %c0_5 = arith.constant 0 : index
    %6 = vector.load %arg3[%c0_4, %c0_5] : memref<8x256xf32, #tpu.memory_space<vmem>>, vector<8x128xf32>
    tpu.vector_store %arg3[%c0_4, %c0_5], %5 {strides = array<i32>} : memref<8x256xf32, #tpu.memory_space<vmem>>, vector<8x128xf32>,
    %7 = math.sin %4 : vector<8x128xf32>
    %c0_6 = arith.constant 0 : index
    %c128 = arith.constant 128 : index
    %8 = vector.load %arg3[%c0_6, %c128] : memref<8x256xf32, #tpu.memory_space<vmem>>, vector<8x128xf32>
    tpu.vector_store %arg3[%c0_6, %c128], %7 {strides = array<i32>} : memref<8x256xf32, #tpu.memory_space<vmem>>, vector<8x128xf32>,
    return
  }
  func.func @transform_0(%arg0: i32) -> (i32, i32) {
    %c0_i32 = arith.constant 0 : i32
    %c0_i32_0 = arith.constant 0 : i32
    return %arg0, %c0_i32 : i32, i32
  }
  func.func @transform_1(%arg0: i32) -> (i32, i32) {
    %c0_i32 = arith.constant 0 : i32
    %c0_i32_0 = arith.constant 0 : i32
    %c0_i32_1 = arith.constant 0 : i32
    return %c0_i32, %c0_i32_0 : i32, i32
  }
  func.func @transform_2(%arg0: i32) -> (i32, i32) {
    %c0_i32 = arith.constant 0 : i32
    %c0_i32_0 = arith.constant 0 : i32
    return %arg0, %c0_i32 : i32, i32
  }
}

</mosaic_0001>

<llo_original>
// kernel: tpu_custom_call.1
$region0: #{tpu_custom_call.1}
  #allocation0 [shape = 'u32[]', space=smem, size = 0x4, offset = 0x4, fixed_abs, tag = 'smem constant byte address 0x4 - core index']
  #allocation1 [shape = 'u32[72,128]{1,0:T(1,128)}', space=vmem, size = 0x9000, scoped, tag = 'internal scratch']
  %s0 = inlined_call_operand.vmem [shape: f32[8,4], index: 0, kind: input, shape index: {}]
  %s1 = inlined_call_operand.vmem [shape: f32[4,128], index: 1, kind: input, shape index: {}]
  %s2 = inlined_call_operand.hbm [shape: f32[8,256], index: 2, kind: output, shape index: {}]
  %s3 = sld [smem:[#allocation0]]
  $region18: #{tpu_custom_call.1} parent=0
    _
  %s5 = ssub.s32 1, %s3
  %s6 = scalar_select 0, %s5, %s3
  $region1: #{tpu_custom_call.1} parent=0
    #allocation2 [shape = 'u8[8192]{0}', space=vmem, size = 0x2000, scoped, tag = 'output window, operand 0, single buffered']
    #allocation3 [shape = 's32[1]{0}', space=sflag, size = 0x4, scoped, tag = 'scoped memory for tpu_custom_call.1']
    %7 = vsyncpa [#allocation3], 0
    // Predicated region
    $region2: #{tpu_custom_call.1} parent=1 // pred_check
      _
    $region3: #{tpu_custom_call.1} parent=1 // pred_check_branch
      %9 = sbr.rel (0) target = $region5
    $region4: #{tpu_custom_call.1} parent=1 // pred_region
      _
    $region5: #{tpu_custom_call.1} parent=1 // pred_fallthru
      _
    // Predicated region
    $region6: #{tpu_custom_call.1} parent=1 // pred_check
      _
    $region7: #{tpu_custom_call.1} parent=1 // pred_check_branch
      %11 = sbr.rel (0) target = $region9
    $region8: #{tpu_custom_call.1} parent=1 // pred_region
      _
    $region9: #{tpu_custom_call.1} parent=1 // pred_fallthru
      _
    %v12 = vld [vmem:[%s0] sm:$0xff]
    %v13 = vld [vmem:[%s1] sm:$0xf]
    %vm14 = vcmask 31744
    %v16 = vsel %vm14, %v12, 0
    %vm18 = vcmask 1043456
    %v20 = vsel %vm18, %v13, 0
    %22 = vmatpush.msra.mxu0 0.0
    %23 = vmatpush.msra.mxu0 0.0
    %24 = vmatpush.msra.mxu0 0.0
    %25 = vmatpush.msra.mxu0 0.0
    %26 = vmatpush.msra.mxu0 0.0
    %27 = vmatpush.msra.mxu0 0.0
    %28 = vmatpush.msra.mxu0 0.0
    %29 = vmatpush.msra.mxu0 0.0
    %30 = vmatpush.msra.mxu0 0.0
    %31 = vmatpush.msra.mxu0 0.0
    %32 = vmatpush.msra.mxu0 0.0
    %33 = vmatpush.msra.mxu0 0.0
    %34 = vmatpush.msra.mxu0 0.0
    %35 = vmatpush.msra.mxu0 0.0
    %36 = vmatpush.msra.mxu0 0.0
    %37 = vmatpush.msra.mxu0 %v20
    %38 = vmatmul.f32.gmra.mxu0 %v16
    %v39 = vpop.f32.mrf.mxu0
    %v40 = vadd.f32 0.0, %v39
    %41 = vdwg.mxu0
    %v42 = vmul.f32 %v40, 6.2831855
    %v43 = vand.u32 2147483647, %v42
    %vm44 = vcmp.le.f32.partialorder %v43, 0.7853982
    %vm45 = vcmp.lt.s32.totalorder %v42, 0
    %v46 = vand.u32 %v42, 2139095040
    %v47 = vshrl.u32 %v46, 23
    %v48 = vsub.s32 %v47, 127
    %v49 = vand.u32 2147483647, %v42
    %v50 = vand.u32 %v49, 8388607
    %v51 = vor.u32 %v50, 8388608
    %v52 = vsub.s32 0, %v51
    %v53 = vadd.s32 %v48, 1
    %vm54 = vcmp.gt.s32.totalorder %v53, 0
    %v55 = vsel %vm54, %v53, 0
    %v56 = vshrl.u32 %v55, 5
    %v57 = vand.u32 %v55, 31
    %v58 = vsub.s32 32, %v57
    %v59 = vshrl.u32 683565275, %v58
    %v60 = vshll.u32 683565275, %v57
    %v61 = vshrl.u32 2475754826, %v58
    %v62 = vor.u32 %v60, %v61
    %v63 = vshll.u32 2475754826, %v57
    %v64 = vshrl.u32 2131351028, %v58
    %v65 = vor.u32 %v63, %v64
    %v66 = vshll.u32 2131351028, %v57
    %v67 = vshrl.u32 2102212464, %v58
    %v68 = vor.u32 %v66, %v67
    %v69 = vshll.u32 2102212464, %v57
    %v70 = vshrl.u32 920167782, %v58
    %v71 = vor.u32 %v69, %v70
    %v72 = vshll.u32 920167782, %v57
    %v73 = vshrl.u32 1326507024, %v58
    %v74 = vor.u32 %v72, %v73
    %vm75 = vcmp.lt.s32.totalorder %v56, 1
    %vm76 = vcmp.lt.s32.totalorder %v56, 2
    %vm77 = vcmp.lt.s32.totalorder %v56, 3
    %vm78 = vcmp.lt.s32.totalorder %v56, 4
    %v79 = vsel %vm75, %v59, %v62
    %v80 = vsel %vm78, %v68, 2102212464
    %v81 = vsel %vm77, %v65, %v80
    %v82 = vsel %vm76, %v79, %v81
    %v83 = vsel %vm75, %v62, %v65
    %v84 = vsel %vm78, %v71, 920167782
    %v85 = vsel %vm77, %v68, %v84
    %v86 = vsel %vm76, %v83, %v85
    %v87 = vsel %vm75, %v65, %v68
    %v88 = vsel %vm78, %v74, 1326507024
    %v89 = vsel %vm77, %v71, %v88
    %v90 = vsel %vm76, %v87, %v89
    %v91 = vshll.u32 %v51, 8
    %v92 = vand.u32 %v91, 65535
    %v93 = vshrl.u32 %v91, 16
    %v94 = vand.u32 %v90, 65535
    %v95 = vshrl.u32 %v90, 16
    %v96 = vmul.u32 %v92, %v94
    %v97 = vmul.u32 %v92, %v95
    %v98 = vmul.u32 %v93, %v94
    %v99 = vmul.u32 %v93, %v95
    %v100 = vshll.u32 %v97, 16
    %v101 = vshrl.u32 %v97, 16
    %v102 = vshll.u32 %v98, 16
    %v103 = vshrl.u32 %v98, 16
    %vm104 = vc.u32 %v96, %v100
    %v105 = vsel %vm104, 1, 0
    %v106 = vadd.s32 %v96, %v100
    %v107 = vadd.s32 %v99, %v105
    %vm108 = vc.u32 %v106, %v102
    %v109 = vsel %vm108, 1, 0
    %v110 = vadd.s32 %v106, %v102
    %v111 = vadd.s32 %v107, %v109
    %v112 = vadd.s32 %v111, %v101
    %v113 = vadd.s32 %v112, %v103
    %v114 = vand.u32 %v91, 65535
    %v115 = vshrl.u32 %v91, 16
    %v116 = vand.u32 %v86, 65535
    %v117 = vshrl.u32 %v86, 16
    %v118 = vmul.u32 %v114, %v116
    %v119 = vmul.u32 %v114, %v117
    %v120 = vmul.u32 %v115, %v116
    %v121 = vmul.u32 %v115, %v117
    %v122 = vshll.u32 %v119, 16
    %v123 = vshrl.u32 %v119, 16
    %v124 = vshll.u32 %v120, 16
    %v125 = vshrl.u32 %v120, 16
    %vm126 = vc.u32 %v118, %v122
    %v127 = vsel %vm126, 1, 0
    %v128 = vadd.s32 %v118, %v122
    %v129 = vadd.s32 %v121, %v127
    %vm130 = vc.u32 %v128, %v124
    %v131 = vsel %vm130, 1, 0
    %v132 = vadd.s32 %v128, %v124
    %v133 = vadd.s32 %v129, %v131
    %v134 = vadd.s32 %v133, %v123
    %v135 = vadd.s32 %v134, %v125
    %v136 = vmul.u32 %v91, %v82
    %v137 = vadd.s32 %v113, %v132
    %vm138 = vc.u32 %v113, %v132
    %v139 = vadd.s32 %v135, 1
    %v140 = vsel %vm138, %v139, %v135
    %v141 = vadd.s32 %v136, %v140
    %v142 = vadd.s32 %v141, 536870912
    %v143 = vshrl.u32 %v142, 30
    %v144 = vshll.u32 %v143, 30
    %v145 = vsub.s32 %v141, %v144
    %vm146 = vcmp.lt.s32.totalorder %v145, 0
    %v147 = vsub.s32 0, %v145
    %v148 = vsel %vm146, %v147, %v145
    %v149 = vclz %v148
    %v150 = vsub.s32 %v149, 2
    %vm151 = vcmp.gt.s32.totalorder 0, %v150
    %v152 = vsel %vm151, 0, %v150
    %v153 = vsub.s32 32, %v152
    %v154 = vshll.u32 %v145, %v152
    %v155 = vshrl.u32 %v137, %v153
    %v156 = vor.u32 %v154, %v155
    %v157 = vsub.s32 4294967266, %v152
    %v158 = vadd.s32 %v157, 127
    %v159 = vshll.u32 %v158, 23
    %v160 = vor.u32 4788187, %v159
    %v161 = vand.u32 2147483647, %v160
    %v163 = vcvt.s32.f32 %v156
    %v164 = vmul.f32 %v163, %v161
    %v165 = vxor.u32 %v164, 2147483648
    %v166 = vsel %vm45, %v165, %v164
    %v167 = vsub.s32 4, %v143
    %v168 = vsel %vm45, %v167, %v143
    %v169 = vsel %vm44, %v42, %v166
    %v170 = vsel %vm44, 0, %v168
    %v171 = vmul.f32 %v169, %v169
    %v172 = vmul.f32 %v171, -0.001358992
    %v173 = vadd.f32 %v172, 0.041655596
    %v174 = vmul.f32 %v171, %v173
    %v175 = vadd.f32 %v174, -0.4999988
    %v176 = vmul.f32 %v171, %v175
    %v177 = vadd.f32 1.0, %v176
    %v178 = vmul.f32 %v169, %v169
    %v179 = vmul.f32 %v178, -0.00019511016
    %v180 = vadd.f32 %v179, 0.008332121
    %v181 = vmul.f32 %v178, %v180
    %v182 = vadd.f32 %v181, -0.16666654
    %v183 = vmul.f32 %v178, %v182
    %v184 = vadd.f32 %v183, 1.0
    %v185 = vmul.f32 %v184, %v169
    %vm186 = vweird.f32 %v42
    %v187 = vand.u32 %v170, 3
    %vm188 = vcmp.lt.s32.totalorder %v187, 2
    %vm189 = vcmp.eq.s32.totalorder %v187, 0
    %v190 = vxor.u32 %v185, 2147483648
    %v191 = vsel %vm189, %v177, %v190
    %vm192 = vcmp.eq.s32.totalorder %v187, 2
    %v193 = vxor.u32 %v177, 2147483648
    %v194 = vsel %vm192, %v193, %v185
    %v195 = vsel %vm188, %v191, %v194
    %v196 = vsel %vm186, nan, %v195
    %197 = vst [vmem:[#allocation2] sm:$0xff] %v196
    %v198 = vand.u32 2147483647, %v42
    %vm199 = vcmp.le.f32.partialorder %v198, 0.7853982
    %vm200 = vcmp.lt.s32.totalorder %v42, 0
    %v201 = vand.u32 %v42, 2139095040
    %v202 = vshrl.u32 %v201, 23
    %v203 = vsub.s32 %v202, 127
    %v204 = vand.u32 2147483647, %v42
    %v205 = vand.u32 %v204, 8388607
    %v206 = vor.u32 %v205, 8388608
    %v207 = vsub.s32 0, %v206
    %v208 = vadd.s32 %v203, 1
    %vm209 = vcmp.gt.s32.totalorder %v208, 0
    %v210 = vsel %vm209, %v208, 0
    %v211 = vshrl.u32 %v210, 5
    %v212 = vand.u32 %v210, 31
    %v213 = vsub.s32 32, %v212
    %v214 = vshrl.u32 683565275, %v213
    %v215 = vshll.u32 683565275, %v212
    %v216 = vshrl.u32 2475754826, %v213
    %v217 = vor.u32 %v215, %v216
    %v218 = vshll.u32 2475754826, %v212
    %v219 = vshrl.u32 2131351028, %v213
    %v220 = vor.u32 %v218, %v219
    %v221 = vshll.u32 2131351028, %v212
    %v222 = vshrl.u32 2102212464, %v213
    %v223 = vor.u32 %v221, %v222
    %v224 = vshll.u32 2102212464, %v212
    %v225 = vshrl.u32 920167782, %v213
    %v226 = vor.u32 %v224, %v225
    %v227 = vshll.u32 920167782, %v212
    %v228 = vshrl.u32 1326507024, %v213
    %v229 = vor.u32 %v227, %v228
    %vm230 = vcmp.lt.s32.totalorder %v211, 1
    %vm231 = vcmp.lt.s32.totalorder %v211, 2
    %vm232 = vcmp.lt.s32.totalorder %v211, 3
    %vm233 = vcmp.lt.s32.totalorder %v211, 4
    %v234 = vsel %vm230, %v214, %v217
    %v235 = vsel %vm233, %v223, 2102212464
    %v236 = vsel %vm232, %v220, %v235
    %v237 = vsel %vm231, %v234, %v236
    %v238 = vsel %vm230, %v217, %v220
    %v239 = vsel %vm233, %v226, 920167782
    %v240 = vsel %vm232, %v223, %v239
    %v241 = vsel %vm231, %v238, %v240
    %v242 = vsel %vm230, %v220, %v223
    %v243 = vsel %vm233, %v229, 1326507024
    %v244 = vsel %vm232, %v226, %v243
    %v245 = vsel %vm231, %v242, %v244
    %v246 = vshll.u32 %v206, 8
    %v247 = vand.u32 %v246, 65535
    %v248 = vshrl.u32 %v246, 16
    %v249 = vand.u32 %v245, 65535
    %v250 = vshrl.u32 %v245, 16
    %v251 = vmul.u32 %v247, %v249
    %v252 = vmul.u32 %v247, %v250
    %v253 = vmul.u32 %v248, %v249
    %v254 = vmul.u32 %v248, %v250
    %v255 = vshll.u32 %v252, 16
    %v256 = vshrl.u32 %v252, 16
    %v257 = vshll.u32 %v253, 16
    %v258 = vshrl.u32 %v253, 16
    %vm259 = vc.u32 %v251, %v255
    %v260 = vsel %vm259, 1, 0
    %v261 = vadd.s32 %v251, %v255
    %v262 = vadd.s32 %v254, %v260
    %vm263 = vc.u32 %v261, %v257
    %v264 = vsel %vm263, 1, 0
    %v265 = vadd.s32 %v261, %v257
    %v266 = vadd.s32 %v262, %v264
    %v267 = vadd.s32 %v266, %v256
    %v268 = vadd.s32 %v267, %v258
    %v269 = vand.u32 %v246, 65535
    %v270 = vshrl.u32 %v246, 16
    %v271 = vand.u32 %v241, 65535
    %v272 = vshrl.u32 %v241, 16
    %v273 = vmul.u32 %v269, %v271
    %v274 = vmul.u32 %v269, %v272
    %v275 = vmul.u32 %v270, %v271
    %v276 = vmul.u32 %v270, %v272
    %v277 = vshll.u32 %v274, 16
    %v278 = vshrl.u32 %v274, 16
    %v279 = vshll.u32 %v275, 16
    %v280 = vshrl.u32 %v275, 16
    %vm281 = vc.u32 %v273, %v277
    %v282 = vsel %vm281, 1, 0
    %v283 = vadd.s32 %v273, %v277
    %v284 = vadd.s32 %v276, %v282
    %vm285 = vc.u32 %v283, %v279
    %v286 = vsel %vm285, 1, 0
    %v287 = vadd.s32 %v283, %v279
    %v288 = vadd.s32 %v284, %v286
    %v289 = vadd.s32 %v288, %v278
    %v290 = vadd.s32 %v289, %v280
    %v291 = vmul.u32 %v246, %v237
    %v292 = vadd.s32 %v268, %v287
    %vm293 = vc.u32 %v268, %v287
    %v294 = vadd.s32 %v290, 1
    %v295 = vsel %vm293, %v294, %v290
    %v296 = vadd.s32 %v291, %v295
    %v297 = vadd.s32 %v296, 536870912
    %v298 = vshrl.u32 %v297, 30
    %v299 = vshll.u32 %v298, 30
    %v300 = vsub.s32 %v296, %v299
    %vm301 = vcmp.lt.s32.totalorder %v300, 0
    %v302 = vsub.s32 0, %v300
    %v303 = vsel %vm301, %v302, %v300
    %v304 = vclz %v303
    %v305 = vsub.s32 %v304, 2
    %vm306 = vcmp.gt.s32.totalorder 0, %v305
    %v307 = vsel %vm306, 0, %v305
    %v308 = vsub.s32 32, %v307
    %v309 = vshll.u32 %v300, %v307
    %v310 = vshrl.u32 %v292, %v308
    %v311 = vor.u32 %v309, %v310
    %v312 = vsub.s32 4294967266, %v307
    %v313 = vadd.s32 %v312, 127
    %v314 = vshll.u32 %v313, 23
    %v315 = vor.u32 4788187, %v314
    %v316 = vand.u32 2147483647, %v315
    %v318 = vcvt.s32.f32 %v311
    %v319 = vmul.f32 %v318, %v316
    %v320 = vxor.u32 %v319, 2147483648
    %v321 = vsel %vm200, %v320, %v319
    %v322 = vsub.s32 4, %v298
    %v323 = vsel %vm200, %v322, %v298
    %v324 = vsel %vm199, %v42, %v321
    %v325 = vsel %vm199, 0, %v323
    %v326 = vmul.f32 %v324, %v324
    %v327 = vmul.f32 %v326, -0.001358992
    %v328 = vadd.f32 %v327, 0.041655596
    %v329 = vmul.f32 %v326, %v328
    %v330 = vadd.f32 %v329, -0.4999988
    %v331 = vmul.f32 %v326, %v330
    %v332 = vadd.f32 1.0, %v331
    %v333 = vmul.f32 %v324, %v324
    %v334 = vmul.f32 %v333, -0.00019511016
    %v335 = vadd.f32 %v334, 0.008332121
    %v336 = vmul.f32 %v333, %v335
    %v337 = vadd.f32 %v336, -0.16666654
    %v338 = vmul.f32 %v333, %v337
    %v339 = vadd.f32 %v338, 1.0
    %v340 = vmul.f32 %v339, %v324
    %vm341 = vweird.f32 %v42
    %v342 = vadd.s32 %v325, 3
    %v343 = vand.u32 %v342, 3
    %vm344 = vcmp.lt.s32.totalorder %v343, 2
    %vm345 = vcmp.eq.s32.totalorder %v343, 0
    %v346 = vxor.u32 %v340, 2147483648
    %v347 = vsel %vm345, %v332, %v346
    %vm348 = vcmp.eq.s32.totalorder %v343, 2
    %v349 = vxor.u32 %v332, 2147483648
    %v350 = vsel %vm348, %v349, %v340
    %v351 = vsel %vm344, %v347, %v350
    %v352 = vsel %vm341, nan, %v351
    %353 = vst [vmem:[#allocation2 + $0x8] sm:$0xff] %v352
    // Predicated region
    $region10: #{tpu_custom_call.1} parent=1 // pred_check
      _
    $region11: #{tpu_custom_call.1} parent=1 // pred_check_branch
      %355 = sbr.rel (0) target = $region13
    $region12: #{tpu_custom_call.1} parent=1 // pred_region
      %357 = vsyncadd [#allocation3], 0
      %s359 = sshll.u32 [#allocation2], 4
      %s360 = int_to_ptr.vmem [resolvable:$true] %s359
      %s361 = sshll.u32 %s2, 4
      %s362 = int_to_ptr.hbm [resolvable:$true] %s361
      %364 = dma.vmem_to_hbm [thread:$0]  %s360, 256, %s362, [#allocation3]
    $region13: #{tpu_custom_call.1} parent=1 // pred_fallthru
      _
    // Predicated region
    $region14: #{tpu_custom_call.1} parent=1 // pred_check
      _
    $region15: #{tpu_custom_call.1} parent=1 // pred_check_branch
      %366 = sbr.rel (0) target = $region17
    $region16: #{tpu_custom_call.1} parent=1 // pred_region
      %368 = dma.done [#allocation3], 256
    $region17: #{tpu_custom_call.1} parent=1 // pred_fallthru
      _
    %369 = vsyncpa [#allocation3], 1

</llo_original>
